<compile_context>
chip_gen: v6e
topology: v6e:2x2x1
jax: 0.10.0
libtpu: 0.0.40
codegen_flags: <defaults>
</compile_context>

<pallas_src>
import functools
from typing import Any, Dict, List, Tuple

import jax
import jax.numpy as jnp
from jax.experimental import pallas as pl
from jax.experimental.pallas import tpu as pltpu


def _round_up(x: int, m: int) -> int:
    return (x + m - 1) // m * m


# VMEM budget for live kernel buffers: safe on v5e/v6e (128 MiB physical) and
# v7x (64 MiB physical), while leaving headroom for compiler scratch/spills.
_VMEM_BUDGET = 48 << 20


def _select_row_tile(bt: int, d: int, h: int,
                     x_bytes: int, out_bytes: int, w_bytes: int):
    """Pick the largest row tile (<=512) whose live VMEM stays in budget."""
    def live(t):
        return (2 * t * d * x_bytes        # x row-block, double-buffered
                + 2 * t * h * out_bytes    # emb row-block, double-buffered
                + 2 * d * h * w_bytes      # W (grid-invariant; fetched once)
                + 2 * h * w_bytes          # bias
                + 2 * 128 * 4)             # partial-loss tiles

    tm = min(512, _round_up(bt, 8))
    while tm > 8 and live(tm) > (_VMEM_BUDGET * 3) // 4:
        tm = max(8, _round_up(tm // 2, 8))
    return tm, live(tm)


# ----------------------------------------------------------------------------
# Pallas kernel: fused (row-block) linear projection + bias + partial loss.
# ----------------------------------------------------------------------------
def _embed_loss_kernel(x_ref, w_ref, b_ref, emb_ref, part_ref, *, bt_actual):
    # x_ref:    (tm, D)      row-block of speech features   (VMEM)
    # w_ref:    (D,  H)      projection weight (resident)   (VMEM)
    # b_ref:    (1,  H)      projection bias   (resident)   (VMEM)
    # emb_ref:  (tm, H)      output embeddings row-block    (VMEM)
    # part_ref: (1, 1, 128)  per-block partial sum-of-squares tile (VMEM)
    tm = x_ref.shape[0]

    # MXU matmul in the operands' native dtype (bf16 in fp16 mode), f32 acc.
    y = jnp.dot(x_ref[...], w_ref[...], preferred_element_type=jnp.float32)
    y = y + b_ref[...].astype(jnp.float32)            # VPU add in f32

    emb_ref[...] = y.astype(emb_ref.dtype)

    # Masked sum-of-squares over the valid (non-padded) rows of this block.
    # The last grid block may overhang BT; those rows read unspecified data,
    # but jnp.where (select) keeps them out of the loss and Pallas clips the
    # corresponding output rows on writeback.
    row0 = pl.program_id(0) * tm
    row_ids = row0 + jax.lax.broadcasted_iota(jnp.int32, (tm, 1), 0)
    valid = row_ids < bt_actual
    partial = jnp.sum(jnp.where(valid, y * y, 0.0))

    part_ref[...] = jnp.broadcast_to(partial, (1, 1, 128)).astype(jnp.float32)


# ----------------------------------------------------------------------------
# Wrapper: tiling, pallas_call, final loss reduction.
# ----------------------------------------------------------------------------
@functools.partial(jax.jit, static_argnames=("out_dtype",))
def _speech_projection(x2d: jax.Array, w: jax.Array, b: jax.Array,
                       *, out_dtype=jnp.float32):
    """x2d: [BT, D] -> (embeddings [BT, H] out_dtype, loss scalar f32)."""
    BT, D = x2d.shape
    H = w.shape[1]

    out_itemsize = jnp.dtype(out_dtype).itemsize
    tm, live_bytes = _select_row_tile(BT, D, H, x2d.dtype.itemsize,
                                      out_itemsize, w.dtype.itemsize)
    nblk = pl.cdiv(BT, tm)

    vmem_limit = int(min(_VMEM_BUDGET, max(16 << 20, 2 * live_bytes + (2 << 20))))

    kernel = functools.partial(_embed_loss_kernel, bt_actual=BT)

    flops = 2 * BT * D * H
    bytes_accessed = (x2d.size * x2d.dtype.itemsize
                      + w.size * w.dtype.itemsize
                      + b.size * b.dtype.itemsize
                      + BT * H * out_itemsize
                      + nblk * 128 * 4)

    emb, partials = pl.pallas_call(
        kernel,
        out_shape=(
            jax.ShapeDtypeStruct((BT, H), out_dtype),
            jax.ShapeDtypeStruct((nblk, 1, 128), jnp.float32),
        ),
        grid=(nblk,),
        in_specs=[
            pl.BlockSpec((tm, D), lambda i: (i, 0)),    # x: row-blocked stream
            pl.BlockSpec((D, H), lambda i: (0, 0)),     # W: resident
            pl.BlockSpec((1, H), lambda i: (0, 0)),     # b: resident
        ],
        out_specs=(
            pl.BlockSpec((tm, H), lambda i: (i, 0)),        # emb: row-blocked
            pl.BlockSpec((1, 1, 128), lambda i: (i, 0, 0)),  # loss partials
        ),
        compiler_params=pltpu.CompilerParams(
            dimension_semantics=("parallel",),
            vmem_limit_bytes=vmem_limit,
        ),
        cost_estimate=pl.CostEstimate(
            flops=flops, transcendentals=0, bytes_accessed=bytes_accessed),
    )(x2d, w, b)

    # Finish the mean on the tiny per-block partials in the wrapper so the
    # row axis stays 'parallel' inside the kernel.
    loss = jnp.sum(partials[:, 0, 0]) / jnp.float32(BT * H)
    return emb, loss


# ----------------------------------------------------------------------------
# Concrete JAX realization of the BaseModel interface.
# ----------------------------------------------------------------------------
class BaseModelPallas:
    """Minimal concrete realization of the abstract ICL BaseModel interface."""

    def __init__(self, feat_dim: int = 32, hidden: int = 32, use_fp16: bool = False):
        self.use_fp16 = use_fp16
        self.batch_counter = 0
        # Deterministic parameter init (stand-in for abstract subclass params).
        kw, kb = jax.random.split(jax.random.PRNGKey(42))
        self.w = jax.random.normal(kw, (feat_dim, hidden), jnp.float32) * 0.05
        self.b = jax.random.normal(kb, (1, hidden), jnp.float32) * 0.01
        if use_fp16:
            # TODO(synk): torch autocast has no direct equivalent; emulate via
            # bf16 params + bf16 activations fed straight to the MXU.
            self.w = self.w.astype(jnp.bfloat16)
            self.b = self.b.astype(jnp.bfloat16)

    @classmethod
    def from_config(cls, config: Dict[str, Any]) -> "BaseModelPallas":
        return cls(
            feat_dim=config.get("feat_dim", 32),
            hidden=config.get("hidden", 32),
            use_fp16=config.get("use_fp16", False),
        )

    def get_speech_embeddings(self, samples: Dict[str, Any]) -> Tuple[jax.Array, jax.Array]:
        speech = samples["speech"]                      # [B, T, D]
        B, T, D = speech.shape
        if self.use_fp16:
            x2d = speech.reshape(B * T, D).astype(jnp.bfloat16)
            out_dtype = jnp.bfloat16
        else:
            x2d = speech.reshape(B * T, D).astype(jnp.float32)
            out_dtype = jnp.float32
        emb2d, loss = _speech_projection(x2d, self.w, self.b, out_dtype=out_dtype)
        return emb2d.reshape(B, T, -1), loss

    def forward(self, samples: Dict[str, Any]) -> Dict[str, Any]:
        self.batch_counter += 1
        emb, loss = self.get_speech_embeddings(samples)
        return {"loss": loss.reshape(()), "embeddings": emb}

    def generate_output(self, samples: Dict[str, Any]) -> List[str]:
        emb, _ = self.get_speech_embeddings(samples)
        # Trivial decode: argmax over hidden dim of the mean-pooled embedding.
        ids = jnp.argmax(emb.astype(jnp.float32).mean(axis=1), axis=-1)
        return [f"token_{int(i)}" for i in ids]


# ----------------------------------------------------------------------------
# Main
# ----------------------------------------------------------------------------
if __name__ == "__main__":
    B, T, D, H = 2, 8, 32, 32
    key = jax.random.PRNGKey(0)
    speech = jax.random.normal(key, (B, T, D), jnp.float32)

    # ---- f32 path: exact-ish check against a pure-JAX reference -------------
    model = BaseModelPallas(feat_dim=D, hidden=H, use_fp16=False)
    out = model.forward({"speech": speech})
    jax.block_until_ready(out["loss"])
    jax.block_until_ready(out["embeddings"])

    ref = speech.reshape(B * T, D) @ model.w + model.b
    ref_loss = jnp.mean(ref * ref)
    assert out["embeddings"].shape == (B, T, H)
    assert jnp.allclose(out["embeddings"].reshape(B * T, H), ref,
                        rtol=1e-2, atol=1e-2)
    assert jnp.allclose(out["loss"], ref_loss, rtol=1e-2, atol=1e-3)

    preds = model.generate_output({"speech": speech})
    assert len(preds) == B

    # ---- bf16 ("fp16") path: exercise the mixed-precision MXU feed ----------
    model16 = BaseModelPallas(feat_dim=D, hidden=H, use_fp16=True)
    out16 = model16.forward({"speech": speech})
    jax.block_until_ready(out16["loss"])
    assert out16["embeddings"].shape == (B, T, H)
    assert bool(jnp.isfinite(out16["loss"]))

    print("KERNEL_OK")
</pallas_src>

<mosaic_0001>
module attributes {stable_mosaic.version = 11 : i64} {
  func.func @_embed_loss_kernel(%arg0: i32, %arg1: memref<16x32xf32, #tpu.memory_space<vmem>>, %arg2: memref<32x32xf32, #tpu.memory_space<vmem>>, %arg3: memref<1x32xf32, #tpu.memory_space<vmem>>, %arg4: memref<16x32xf32, #tpu.memory_space<vmem>>, %arg5: memref<1x1x128xf32, #tpu.memory_space<vmem>>) attributes {dimension_semantics = [#tpu.dimension_semantics<parallel>], iteration_bounds = array<i64: 1>, scalar_prefetch = 0 : i64, scratch_operands = 0 : i64, tpu.core_type = #tpu.core_type<tc>, window_params = [{transform_indices = @transform_0, window_bounds = array<i64: 16, 32>}, {pipeline_mode = #tpu.pipeline_mode<synchronous>, transform_indices = @transform_1, window_bounds = array<i64: 32, 32>}, {pipeline_mode = #tpu.pipeline_mode<synchronous>, transform_indices = @transform_2, window_bounds = array<i64: 1, 32>}, {transform_indices = @transform_3, window_bounds = array<i64: 16, 32>}, {transform_indices = @transform_4, window_bounds = array<i64: 1, 1, 128>}]} {
    %c0 = arith.constant 0 : index
    %c0_0 = arith.constant 0 : index
    %0 = vector.load %arg1[%c0, %c0_0] : memref<16x32xf32, #tpu.memory_space<vmem>>, vector<16x32xf32>
    %c0_1 = arith.constant 0 : index
    %c0_2 = arith.constant 0 : index
    %1 = vector.load %arg2[%c0_1, %c0_2] : memref<32x32xf32, #tpu.memory_space<vmem>>, vector<32x32xf32>
    %cst = arith.constant dense<0.000000e+00> : vector<16x32xf32>
    %2 = tpu.matmul %0, %1, %cst {dimension_numbers = #tpu.dot_dimension_numbers<[1], [0], [0], [1], [0, 0, 1, 1], [], []>} : vector<16x32xf32>, vector<32x32xf32>, vector<16x32xf32> -> vector<16x32xf32>
    %c0_3 = arith.constant 0 : index
    %c0_4 = arith.constant 0 : index
    %3 = vector.load %arg3[%c0_3, %c0_4] : memref<1x32xf32, #tpu.memory_space<vmem>>, vector<1x32xf32>
    %4 = vector.broadcast %3 : vector<1x32xf32> to vector<16x32xf32>
    %5 = arith.addf %2, %4 : vector<16x32xf32>
    %c0_5 = arith.constant 0 : index
    %c0_6 = arith.constant 0 : index
    %6 = vector.load %arg4[%c0_5, %c0_6] : memref<16x32xf32, #tpu.memory_space<vmem>>, vector<16x32xf32>
    tpu.vector_store %arg4[%c0_5, %c0_6], %5 {strides = array<i32>} : memref<16x32xf32, #tpu.memory_space<vmem>>, vector<16x32xf32>,
    %c16_i32 = arith.constant 16 : i32
    %7 = arith.muli %arg0, %c16_i32 : i32
    %8 = tpu.iota {dimensions = array<i32: 0>} : vector<16x1xi32>
    %9 = vector.broadcast %7 : i32 to vector<16x1xi32>
    %10 = arith.addi %9, %8 : vector<16x1xi32>
    %c16_i32_7 = arith.constant 16 : i32
    %11 = vector.broadcast %c16_i32_7 : i32 to vector<16x1xi32>
    %12 = arith.cmpi slt, %10, %11 : vector<16x1xi32>
    %13 = arith.mulf %5, %5 : vector<16x32xf32>
    %cst_8 = arith.constant 0.000000e+00 : f32
    %14 = vector.shape_cast %12 : vector<16x1xi1> to vector<16x1xi1>
    %15 = vector.broadcast %14 : vector<16x1xi1> to vector<16x32xi1>
    %16 = vector.broadcast %cst_8 : f32 to vector<16x32xf32>
    %17 = arith.select %15, %13, %16 : vector<16x32xi1>, vector<16x32xf32>
    %18 = vector.shape_cast %17 : vector<16x32xf32> to vector<1x16x32xf32>
    %cst_9 = arith.constant dense<0.000000e+00> : vector<1xf32>
    %19 = vector.multi_reduction <add>, %18, %cst_9 [1, 2] : vector<1x16x32xf32> to vector<1xf32>
    %20 = vector.shape_cast %19 : vector<1xf32> to vector<1x1x1xf32>
    %21 = vector.extract %20[0, 0, 0] : f32 from vector<1x1x1xf32>
    %22 = vector.broadcast %21 : f32 to vector<1x1x128xf32>
    %c0_10 = arith.constant 0 : index
    %c0_11 = arith.constant 0 : index
    %c0_12 = arith.constant 0 : index
    %23 = vector.load %arg5[%c0_10, %c0_11, %c0_12] : memref<1x1x128xf32, #tpu.memory_space<vmem>>, vector<1x1x128xf32>
    tpu.vector_store %arg5[%c0_10, %c0_11, %c0_12], %22 {strides = array<i32>} : memref<1x1x128xf32, #tpu.memory_space<vmem>>, vector<1x1x128xf32>,
    return
  }
  func.func @transform_0(%arg0: i32) -> (i32, i32) {
    %c0_i32 = arith.constant 0 : i32
    %c0_i32_0 = arith.constant 0 : i32
    return %arg0, %c0_i32 : i32, i32
  }
  func.func @transform_1(%arg0: i32) -> (i32, i32) {
    %c0_i32 = arith.constant 0 : i32
    %c0_i32_0 = arith.constant 0 : i32
    %c0_i32_1 = arith.constant 0 : i32
    return %c0_i32, %c0_i32_0 : i32, i32
  }
  func.func @transform_2(%arg0: i32) -> (i32, i32) {
    %c0_i32 = arith.constant 0 : i32
    %c0_i32_0 = arith.constant 0 : i32
    %c0_i32_1 = arith.constant 0 : i32
    return %c0_i32, %c0_i32_0 : i32, i32
  }
  func.func @transform_3(%arg0: i32) -> (i32, i32) {
    %c0_i32 = arith.constant 0 : i32
    %c0_i32_0 = arith.constant 0 : i32
    return %arg0, %c0_i32 : i32, i32
  }
  func.func @transform_4(%arg0: i32) -> (i32, i32, i32) {
    %c0_i32 = arith.constant 0 : i32
    %c0_i32_0 = arith.constant 0 : i32
    %c0_i32_1 = arith.constant 0 : i32
    return %arg0, %c0_i32, %c0_i32_0 : i32, i32, i32
  }
}

</mosaic_0001>

<llo_original>
// kernel: _speech_projection.1
$region0: #{_speech_projection.1}
  #allocation0 [shape = 'u32[]', space=smem, size = 0x4, offset = 0x4, fixed_abs, tag = 'smem constant byte address 0x4 - core index']
  #allocation1 [shape = 'u32[144,128]{1,0:T(1,128)}', space=vmem, size = 0x12000, scoped, tag = 'internal scratch']
  %s0 = inlined_call_operand.hbm [shape: f32[16,32], index: 0, kind: input, shape index: {}]
  %s1 = inlined_call_operand.hbm [shape: f32[32,32], index: 1, kind: input, shape index: {}]
  %s2 = inlined_call_operand.hbm [shape: f32[1,32], index: 2, kind: input, shape index: {}]
  %s3 = inlined_call_operand.hbm [shape: f32[16,32], index: 3, kind: output, shape index: {0}]
  %s4 = inlined_call_operand.vmem [shape: f32[1,1,128], index: 4, kind: output, shape index: {1}]
  %5 = xla_tuple %s3, %s4
  %s6 = sld [smem:[#allocation0]]
  $region42: #{_speech_projection.1} parent=0
    _
  %s8 = ssub.s32 1, %s6
  %s9 = scalar_select 0, %s8, %s6
  $region1: #{_speech_projection.1} parent=0
    #allocation2 [shape = 'u8[8192]{0}', space=vmem, size = 0x2000, scoped, tag = 'input window, operand 0, single buffered']
    #allocation3 [shape = 's32[1]{0}', space=sflag, size = 0x4, scoped, tag = 'scoped memory for _speech_projection.1']
    #allocation4 [shape = 's32[1]{0}', space=sflag, size = 0x4, scoped, tag = 'scoped memory for _speech_projection.1']
    #allocation5 [shape = 'u8[16384]{0}', space=vmem, size = 0x4000, scoped, tag = 'input window, operand 1, single buffered']
    #allocation6 [shape = 's32[1]{0}', space=sflag, size = 0x4, scoped, tag = 'scoped memory for _speech_projection.1']
    #allocation7 [shape = 'u8[512]{0}', space=vmem, size = 0x400, scoped, tag = 'input window, operand 2, single buffered']
    #allocation8 [shape = 'u8[8192]{0}', space=vmem, size = 0x2000, scoped, tag = 'output window, operand 0, single buffered']
    %10 = vsyncpa [#allocation3], 0
    %11 = vsyncpa [#allocation6], 0
    %12 = vsyncpa [#allocation4], 0
    // Predicated region
    $region2: #{_speech_projection.1} parent=1 // pred_check
      _
    $region3: #{_speech_projection.1} parent=1 // pred_check_branch
      %14 = sbr.rel (0) target = $region5
    $region4: #{_speech_projection.1} parent=1 // pred_region
      %s16 = ssub.s32 256, 256
      %17 = vsyncadd [#allocation3], %s16
      %s18 = sshll.u32 [#allocation2], 4
      %s19 = int_to_ptr.vmem [resolvable:$true] %s18
      %24 = dma.hbm_to_vmem [thread:$0]  %s0, 256, %s19, [#allocation3], 128, 128, 8
    $region5: #{_speech_projection.1} parent=1 // pred_fallthru
      _
    // Predicated region
    $region6: #{_speech_projection.1} parent=1 // pred_check
      _
    $region7: #{_speech_projection.1} parent=1 // pred_check_branch
      %26 = sbr.rel (0) target = $region9
    $region8: #{_speech_projection.1} parent=1 // pred_region
      %s28 = ssub.s32 512, 512
      %29 = vsyncadd [#allocation6], %s28
      %s30 = sshll.u32 [#allocation5], 4
      %s31 = int_to_ptr.vmem [resolvable:$true] %s30
      %36 = dma.hbm_to_vmem [thread:$0]  %s1, 512, %s31, [#allocation6], 128, 128, 8
    $region9: #{_speech_projection.1} parent=1 // pred_fallthru
      _
    // Predicated region
    $region10: #{_speech_projection.1} parent=1 // pred_check
      _
    $region11: #{_speech_projection.1} parent=1 // pred_check_branch
      %38 = sbr.rel (0) target = $region13
    $region12: #{_speech_projection.1} parent=1 // pred_region
      %s40 = ssub.s32 16, 16
      %41 = vsyncadd [#allocation6], %s40
      %s43 = sshll.u32 [#allocation7], 4
      %s44 = int_to_ptr.vmem [resolvable:$true] %s43
      %46 = dma.hbm_to_vmem [thread:$0]  %s2, 16, %s44, [#allocation6]
    $region13: #{_speech_projection.1} parent=1 // pred_fallthru
      _
    // Predicated region
    $region14: #{_speech_projection.1} parent=1 // pred_check
      _
    $region15: #{_speech_projection.1} parent=1 // pred_check_branch
      %48 = sbr.rel (0) target = $region17
    $region16: #{_speech_projection.1} parent=1 // pred_region
      %49 = dma.done [#allocation3], 256
    $region17: #{_speech_projection.1} parent=1 // pred_fallthru
      _
    // Predicated region
    $region18: #{_speech_projection.1} parent=1 // pred_check
      _
    $region19: #{_speech_projection.1} parent=1 // pred_check_branch
      %51 = sbr.rel (0) target = $region21
    $region20: #{_speech_projection.1} parent=1 // pred_region
      %52 = dma.done [#allocation6], 512
    $region21: #{_speech_projection.1} parent=1 // pred_fallthru
      _
    // Predicated region
    $region22: #{_speech_projection.1} parent=1 // pred_check
      _
    $region23: #{_speech_projection.1} parent=1 // pred_check_branch
      %54 = sbr.rel (0) target = $region25
    $region24: #{_speech_projection.1} parent=1 // pred_region
      %55 = dma.done [#allocation6], 16
    $region25: #{_speech_projection.1} parent=1 // pred_fallthru
      _
    %v56 = vld [vmem:[#allocation2] sm:$0xff]
    %v57 = vld [vmem:[#allocation2 + $0x8] sm:$0xff]
    %v58 = vld [vmem:[#allocation5] sm:$0xff]
    %v59 = vld [vmem:[#allocation5 + $0x8] sm:$0xff]
    %v60 = vld [vmem:[#allocation5 + $0x10] sm:$0xff]
    %v61 = vld [vmem:[#allocation5 + $0x18] sm:$0xff]
    %v62 = vld [vmem:[#allocation7] sm:$0x1]
    %v64 = vlaneseq
    %v65 = vshrl.u32 %v64, 7
    %v66 = vsub.s32 0, %v65
    %v67 = vrot.slane %v62, %v66
    %vm69 = vcmask 261120
    %v71 = vsel %vm69, %v56, 0
    %v74 = vsel %vm69, %v57, 0
    %76 = vmatprep.subr.mxu0 0.0
    %77 = vmatpush1.msra.mxu0 0.0
    %78 = vmatprep.subr.mxu0 0.0
    %79 = vmatpush1.msra.mxu0 0.0
    %80 = vmatprep.subr.mxu0 0.0
    %81 = vmatpush1.msra.mxu0 0.0
    %82 = vmatprep.subr.mxu0 0.0
    %83 = vmatpush1.msra.mxu0 0.0
    %84 = vmatprep.subr.mxu0 0.0
    %85 = vmatpush1.msra.mxu0 0.0
    %86 = vmatprep.subr.mxu0 0.0
    %87 = vmatpush1.msra.mxu0 0.0
    %88 = vmatprep.subr.mxu0 0.0
    %89 = vmatpush1.msra.mxu0 0.0
    %90 = vmatprep.subr.mxu0 0.0
    %91 = vmatpush1.msra.mxu0 0.0
    %92 = vmatprep.subr.mxu0 0.0
    %93 = vmatpush1.msra.mxu0 0.0
    %94 = vmatprep.subr.mxu0 0.0
    %95 = vmatpush1.msra.mxu0 0.0
    %96 = vmatprep.subr.mxu0 0.0
    %97 = vmatpush1.msra.mxu0 0.0
    %98 = vmatprep.subr.mxu0 0.0
    %99 = vmatpush1.msra.mxu0 0.0
    %100 = vmatprep.subr.mxu0 0.0
    %101 = vmatpush1.msra.mxu0 %v61
    %102 = vmatprep.subr.mxu0 0.0
    %103 = vmatpush1.msra.mxu0 %v60
    %104 = vmatprep.subr.mxu0 0.0
    %105 = vmatpush1.msra.mxu0 %v59
    %106 = vmatprep.subr.mxu0 0.0
    %107 = vmatpush1.msra.mxu0 %v58
    %108 = vmatprep.subr.mxu0 0.0
    %109 = vmatpush2.msra.mxu0 0.0
    %110 = vmatprep.subr.mxu0 0.0
    %111 = vmatpush2.msra.mxu0 0.0
    %112 = vmatprep.subr.mxu0 0.0
    %113 = vmatpush2.msra.mxu0 0.0
    %114 = vmatprep.subr.mxu0 0.0
    %115 = vmatpush2.msra.mxu0 0.0
    %116 = vmatprep.subr.mxu0 0.0
    %117 = vmatpush2.msra.mxu0 0.0
    %118 = vmatprep.subr.mxu0 0.0
    %119 = vmatpush2.msra.mxu0 0.0
    %120 = vmatprep.subr.mxu0 0.0
    %121 = vmatpush2.msra.mxu0 0.0
    %122 = vmatprep.subr.mxu0 0.0
    %123 = vmatpush2.msra.mxu0 0.0
    %124 = vmatprep.subr.mxu0 0.0
    %125 = vmatpush2.msra.mxu0 0.0
    %126 = vmatprep.subr.mxu0 0.0
    %127 = vmatpush2.msra.mxu0 0.0
    %128 = vmatprep.subr.mxu0 0.0
    %129 = vmatpush2.msra.mxu0 0.0
    %130 = vmatprep.subr.mxu0 0.0
    %131 = vmatpush2.msra.mxu0 0.0
    %132 = vmatprep.subr.mxu0 0.0
    %133 = vmatpush2.msra.mxu0 0.0
    %134 = vmatprep.subr.mxu0 0.0
    %135 = vmatpush2.msra.mxu0 0.0
    %136 = vmatprep.subr.mxu0 0.0
    %137 = vmatpush2.msra.mxu0 0.0
    %138 = vmatprep.subr.mxu0 0.0
    %139 = vmatpush2.msra.mxu0 0.0
    %140 = vmatprep.mubr.f32.mxu0 0.0
    %141 = vmatmul.mubr.f32.gmra.mxu0 %v71
    %v142 = vpop.f32.mrf.mxu0
    %v143 = vadd.f32 %v67, %v142
    %v144 = vpop.f32.mrf.mxu0
    %145 = vmatprep.mubr.f32.mxu0 0.0
    %146 = vmatmul.mubr.f32.gmra.mxu0 %v74
    %v147 = vpop.f32.mrf.mxu0
    %v148 = vadd.f32 %v67, %v147
    %v149 = vpop.f32.mrf.mxu0
    %150 = vdwg.mxu0
    %151 = vst.msk [vmem:[#allocation8] sm:$0xff] %vm69, %v143
    %152 = vst.msk [vmem:[#allocation8 + $0x8] sm:$0xff] %vm69, %v148
    %s153 = smul.u32 0, 16
    %v154 = vlaneseq
    %v155 = vshrl.u32 %v154, 7
    %v156 = vadd.s32 %v155, 8
    %v157 = vstv %s153
    %v158 = vadd.s32 %v157, %v155
    %v159 = vadd.s32 %v157, %v156
    %vm160 = vcmp.lt.s32.totalorder %v158, 16
    %vm161 = vcmp.lt.s32.totalorder %v159, 16
    %v162 = vmul.f32 %v143, %v143
    %v163 = vmul.f32 %v148, %v148
    %v164 = vsel %vm160, 1, 0
    %v165 = vsel %vm161, 1, 0
    %vm166 = vcmp.eq.s32.totalorder %v164, 1
    %vm167 = vcmp.eq.s32.totalorder %v165, 1
    %v168 = vsel %vm166, %v162, 0.0
    %v169 = vsel %vm167, %v163, 0.0
    %v170 = vsel %vm69, %v168, 0.0
    %v171 = vsel %vm69, %v169, 0.0
    %v172 = vadd.f32 %v170, %v171
    %173 = vadd.xlane.f32.xlu0 %v172
    %v174 = vpop.xlane.xlu0 %173
    %v175 = vrot.slane %v174, 4
    %v176 = vadd.f32 %v174, %v175
    %v177 = vrot.slane %v176, 2
    %v178 = vadd.f32 %v176, %v177
    %v179 = vrot.slane %v178, 1
    %v180 = vadd.f32 %v178, %v179
    %s181 = vtos %v180
    %v182 = vstv %s181
    %183 = vst [vmem:[%s4] sm:$0x1] %v182
    // Predicated region
    $region26: #{_speech_projection.1} parent=1 // pred_check
      _
    $region27: #{_speech_projection.1} parent=1 // pred_check_branch
      %185 = sbr.rel (0) target = $region29
    $region28: #{_speech_projection.1} parent=1 // pred_region
      %s187 = ssub.s32 256, 256
      %188 = vsyncadd [#allocation4], %s187
      %s189 = sshll.u32 [#allocation8], 4
      %s190 = int_to_ptr.vmem [resolvable:$true] %s189
      %195 = dma.vmem_to_hbm [thread:$0]  %s190, 256, %s3, [#allocation4], 128, 128, 8
    $region29: #{_speech_projection.1} parent=1 // pred_fallthru
      _
    // Predicated region
    $region30: #{_speech_projection.1} parent=1 // pred_check
      _
    $region31: #{_speech_projection.1} parent=1 // pred_check_branch
      %197 = sbr.rel (0) target = $region33
    $region32: #{_speech_projection.1} parent=1 // pred_region
      _
    $region33: #{_speech_projection.1} parent=1 // pred_fallthru
      _
    // Predicated region
    $region34: #{_speech_projection.1} parent=1 // pred_check
      _
    $region35: #{_speech_projection.1} parent=1 // pred_check_branch
      %199 = sbr.rel (0) target = $region37
    $region36: #{_speech_projection.1} parent=1 // pred_region
      %200 = dma.done [#allocation4], 256
    $region37: #{_speech_projection.1} parent=1 // pred_fallthru
      _
    // Predicated region
    $region38: #{_speech_projection.1} parent=1 // pred_check
      _
    $region39: #{_speech_projection.1} parent=1 // pred_check_branch
      %202 = sbr.rel (0) target = $region41
    $region40: #{_speech_projection.1} parent=1 // pred_region
      _
    $region41: #{_speech_projection.1} parent=1 // pred_fallthru
      _
    %203 = vsyncpa [#allocation3], 1
    %204 = vsyncpa [#allocation6], 1
    %205 = vsyncpa [#allocation4], 1

</llo_original>
